<compile_context>
chip_gen: v5e
topology: v5e:2x2
jax: 0.10.0
libtpu: 0.0.40
codegen_flags: <defaults>
</compile_context>

<pallas_src>
import functools

import jax
import jax.numpy as jnp
from jax import lax
from jax.experimental import pallas as pl
from jax.experimental.pallas import tpu as pltpu


# ----------------------------------------------------------------------------
# Pallas kernel 1: adaptive supports for ALL layers / both gates in ONE launch.
# E@E.T -> relu -> row-softmax is shared; only the SpatialAttention 1x1-conv
# weight differs per (layer, gate), so all G = 2*L of them are batched.
# ----------------------------------------------------------------------------
def _supports_kernel(e_ref, et_ref, adj_ref, saw_ref, out_ref, *, N, K, G):
    E = e_ref[...]                                   # (N, D)
    adj = adj_ref[...]                               # (N, N)

    a = jnp.maximum(jnp.dot(E, et_ref[...], preferred_element_type=jnp.float32), 0.0)
    a = a - jnp.max(a, axis=1, keepdims=True)        # row softmax (dim=1)
    ea = jnp.exp(a)
    s = ea / jnp.sum(ea, axis=1, keepdims=True)      # (N, N) base supports

    z = jnp.concatenate([s, adj], axis=1)            # (N, 2N)
    # all G SpatialAttention 1x1 convs at once: (N, 2N) @ (2N, G*N)
    s2_all = jax.nn.sigmoid(jnp.dot(z, saw_ref[...], preferred_element_type=jnp.float32))

    row = jax.lax.broadcasted_iota(jnp.int32, (N, N), 0)
    col = jax.lax.broadcasted_iota(jnp.int32, (N, N), 1)
    eye = (row == col).astype(jnp.float32)

    for g in range(G):
        s2 = s2_all[:, g * N:(g + 1) * N]
        sup = s2 * adj + (1.0 - s2) * s
        terms = [eye, sup]
        for _ in range(2, K):
            terms.append(2.0 * jnp.dot(sup, terms[-1],
                                       preferred_element_type=jnp.float32) - terms[-2])
        for i in range(K):
            out_ref[g * K + i] = terms[i]


def compute_all_supports(E, adj, saw_list, K):
    N = E.shape[0]
    G = len(saw_list)
    saw_all = jnp.concatenate([w.T for w in saw_list], axis=1)   # (2N, G*N)
    kern = functools.partial(_supports_kernel, N=N, K=K, G=G)
    out = pl.pallas_call(
        kern,
        out_shape=jax.ShapeDtypeStruct((G * K, N, N), jnp.float32),
    )(E, E.T, adj, saw_all)
    return out.reshape(G, K, N, N)


# ----------------------------------------------------------------------------
# Pallas kernel 2: AGCRN cell recurrence for one layer.
# Grid = (batch_blocks, time_chunks); the hidden state lives in f32 VMEM scratch
# and is carried across time chunks (T axis is "arbitrary" => sequential).
# Row layout inside a batch block: flat row = n*Bp + b ; feature is the lane dim.
# ----------------------------------------------------------------------------
def _cell_seq_kernel(xf_ref, h0_ref, sg_ref, su_ref, wg_ref, wu_ref, e_ref,
                     out_ref, state, *, K, H, D, N, Bp, TC):
    c = pl.program_id(1)

    @pl.when(c == 0)
    def _():
        state[...] = h0_ref[0]                        # (NB, H) f32

    NB = N * Bp
    e = e_ref[...]                                    # (NB, D) f32 (E replicated over b)

    def h_gcn(v, sup_ref, w_ref, O):
        # state-dependent half of AVWGCN, factored through the weights pool:
        #   out[n,b,o] = sum_d E[n,d] * sum_{k,hh} (sup[k]@v)[n,b,hh] * wpool[d,k,Ci+hh,o]
        vm = v.reshape(N, Bp * H).astype(jnp.bfloat16)
        # fused graph diffusion over all K chebyshev terms (one MXU matmul)
        dif = jnp.dot(sup_ref[...], vm, preferred_element_type=jnp.float32)   # (K*N, Bp*H)
        y = jnp.concatenate(
            [dif[k * N:(k + 1) * N, :].reshape(NB, H) for k in range(K)],
            axis=-1)                                                           # (NB, K*H) f32
        # d-split accumulate: scale the LHS per embedding dim and let the MXU
        # accumulate -> the (NB, D*O) intermediate is never materialized.
        acc = jnp.zeros((NB, O), jnp.float32)
        for d in range(D):
            lhs = (e[:, d:d + 1] * y).astype(jnp.bfloat16)                     # (NB, K*H)
            acc = acc + jnp.dot(lhs, w_ref[d], preferred_element_type=jnp.float32)
        return acc

    def step(tt, h):
        xz = xf_ref[0, tt]                                            # (NB, 3H) bf16
        # gate GCN (state half) + precomputed x-projection (incl. bias)
        zr = jax.nn.sigmoid(xz[:, :2 * H].astype(jnp.float32)
                            + h_gcn(h, sg_ref, wg_ref, 2 * H))        # (NB, 2H)
        z = zr[:, :H]
        r = zr[:, H:]
        hc = jnp.tanh(xz[:, 2 * H:].astype(jnp.float32)
                      + h_gcn(z * h, su_ref, wu_ref, H))              # (NB, H)
        h_new = r * h + (1.0 - r) * hc
        # TODO(synk): last dim H < 128 -> masked stores; lane-dense (N, Bp*H) layout
        # would need an extra in-kernel relayout, so we only halve bytes via bf16 here.
        out_ref[0, tt] = h_new.astype(out_ref.dtype)
        return h_new

    state[...] = lax.fori_loop(0, TC, step, state[...])


def _vmem_cap_bytes():
    try:
        return int(pltpu.get_tpu_info().vmem_capacity_bytes)
    except Exception:
        return 64 * 1024 * 1024           # conservative (v7x per-TensorCore)


def _pick_time_chunk(T, NBp, H, budget_bytes=4 << 20):
    # largest divisor of T whose double-buffered bf16 in+out chunk fits the budget
    per_t = NBp * (3 * H + H) * 2 * 2
    tc = 1
    for cand in range(1, T + 1):
        if T % cand == 0 and cand * per_t <= budget_bytes:
            tc = cand
    return tc


def run_layer(xf, h0, sgf, suf, wg, wu, e_nb, *, K, H, D, N, Bp):
    P, T, NBp, F3 = xf.shape
    TC = _pick_time_chunk(T, NBp, H)
    nchunks = T // TC

    kern = functools.partial(_cell_seq_kernel, K=K, H=H, D=D, N=N, Bp=Bp, TC=TC)

    def cspec(shape):
        n = len(shape)
        return pl.BlockSpec(shape, lambda p, c: (0,) * n)

    # generation-aware VMEM limit derived from actual buffer sizes (+ headroom),
    # capped below the physical capacity of the current chip.
    buf_bytes = (
        2 * TC * NBp * 3 * H * 2          # streamed x-projection (bf16, double-buffered)
        + 2 * TC * NBp * H * 2            # streamed output (bf16, double-buffered)
        + 2 * NBp * H * 4                 # h0
        + 2 * (sgf.size + suf.size) * 2   # supports (bf16)
        + 2 * (wg.size + wu.size) * 2     # factored h-side pools (bf16)
        + 2 * NBp * max(e_nb.shape[1], 128) * 4  # embeddings (lane-padded)
        + NBp * H * 4                     # recurrent state scratch
        + NBp * (2 * K * H + 8 * H) * 4   # rough in-body live intermediates
    )
    vmem_limit = max(min(int(buf_bytes * 1.5) + (4 << 20),
                         int(_vmem_cap_bytes() * 0.8)),
                     32 << 20)

    return pl.pallas_call(
        kern,
        out_shape=jax.ShapeDtypeStruct((P, T, NBp, H), jnp.bfloat16),
        grid=(P, nchunks),
        in_specs=[
            pl.BlockSpec((1, TC, NBp, F3), lambda p, c: (p, c, 0, 0)),   # fused x-proj
            pl.BlockSpec((1, NBp, H), lambda p, c: (p, 0, 0)),           # h0 per batch block
            cspec(sgf.shape),                                            # gate supports
            cspec(suf.shape),                                            # update supports
            cspec(wg.shape),                                             # gate h-side pool
            cspec(wu.shape),                                             # update h-side pool
            cspec(e_nb.shape),                                           # embeddings
        ],
        out_specs=pl.BlockSpec((1, TC, NBp, H), lambda p, c: (p, c, 0, 0)),
        scratch_shapes=[pltpu.VMEM((NBp, H), jnp.float32)],
        compiler_params=pltpu.CompilerParams(
            # batch blocks independent (megacore on v7x); time must stay sequential
            dimension_semantics=("parallel", "arbitrary"),
            vmem_limit_bytes=vmem_limit,
        ),
    )(xf, h0, sgf, suf, wg, wu, e_nb)


# ----------------------------------------------------------------------------
# Full AVWDCRNN forward (wrapper, PyTorch shape conventions at the boundary)
# ----------------------------------------------------------------------------
def avwdcrnn_forward(x, init_state, node_embeddings, adj_m, params, cheb_k):
    # x: (B, T, N, Ci); init_state: (L, B, N, H)
    B, T, N, _ = x.shape
    H = init_state.shape[-1]
    D = node_embeddings.shape[1]
    K = cheb_k
    E = node_embeddings

    P = 2 if (B % 2 == 0 and B >= 2) else 1     # batch blocks (2nd TC on v7x)
    Bp = B // P
    NBp = N * Bp

    # All chebyshev supports (both gates, every layer) in ONE Pallas launch.
    saw_list = []
    for lp in params:
        saw_list += [lp['gate']['saw'], lp['update']['saw']]
    sups = compute_all_supports(E, adj_m, saw_list, K)           # (2L, K, N, N) f32

    e_nb = jnp.repeat(E, Bp, axis=0)                             # (N*Bp, D), row = n*Bp+b

    # internal layout between layers: (P, T, N, Bp, feat)
    cur_int = jnp.transpose(x.reshape(P, Bp, T, N, -1), (0, 2, 3, 1, 4))

    output_hidden = []
    for i, lp in enumerate(params):
        Ci = cur_int.shape[-1]
        sup_g = sups[2 * i]
        sup_u = sups[2 * i + 1]

        # ---- input-dependent half of both GCNs for ALL timesteps at once (XLA) ----
        # Emitted directly in the kernel's (P,T,N,Bp,O) order; bias folded in; the
        # per-node (K,N,C,O) weights are never materialized.
        def x_proj(sup, wpool, bpool):
            xd = jnp.einsum('knm,ptmbc->ptnbkc', sup, cur_int)
            xp = jnp.einsum('ptnbkc,dkco,nd->ptnbo', xd, wpool[:, :, :Ci, :], E)
            return xp + (E @ bpool)[None, None, :, None, :]

        Xg = x_proj(sup_g, lp['gate']['wpool'], lp['gate']['bpool'])       # (P,T,N,Bp,2H)
        Xu = x_proj(sup_u, lp['update']['wpool'], lp['update']['bpool'])   # (P,T,N,Bp,H)
        # fused bf16 stream: one DMA per step instead of two, half the bytes
        xf = jnp.concatenate([Xg, Xu], axis=-1).astype(jnp.bfloat16).reshape(P, T, NBp, 3 * H)

        # ---- state-dependent half: factored h-side weights (D, K*H, O) in bf16 ----
        def h_weight(wpool):
            O = wpool.shape[-1]
            return wpool[:, :, Ci:, :].reshape(D, K * H, O).astype(jnp.bfloat16)

        wg = h_weight(lp['gate']['wpool'])                                 # (D, K*H, 2H)
        wu = h_weight(lp['update']['wpool'])                               # (D, K*H, H)
        sgf = sup_g.reshape(K * N, N).astype(jnp.bfloat16)
        suf = sup_u.reshape(K * N, N).astype(jnp.bfloat16)
        h0 = jnp.transpose(init_state[i].reshape(P, Bp, N, H),
                           (0, 2, 1, 3)).reshape(P, NBp, H)                # row = n*Bp+b

        out = run_layer(xf, h0, sgf, suf, wg, wu, e_nb,
                        K=K, H=H, D=D, N=N, Bp=Bp)                         # (P,T,NBp,H) bf16
        cur_int = out.reshape(P, T, N, Bp, H)
        last = cur_int[:, -1]                                              # (P, N, Bp, H)
        output_hidden.append(
            jnp.transpose(last, (0, 2, 1, 3)).reshape(B, N, H).astype(jnp.float32))

    out_seq = jnp.transpose(cur_int, (0, 3, 1, 2, 4)).reshape(B, T, N, H).astype(jnp.float32)
    return out_seq, output_hidden


# ----------------------------------------------------------------------------
# Pure-JAX reference (mirrors the PyTorch code literally) for verification
# ----------------------------------------------------------------------------
def _ref_avwgcn(x, E, adj, wpool, bpool, saw, K):
    N = E.shape[0]
    sup = jax.nn.softmax(jnp.maximum(E @ E.T, 0.0), axis=1)
    z = jnp.concatenate([sup, adj], axis=1)
    s2 = jax.nn.sigmoid(z @ saw.T)
    sup = s2 * adj + (1.0 - s2) * sup
    ss = [jnp.eye(N, dtype=jnp.float32), sup]
    for _ in range(2, K):
        ss.append(2.0 * sup @ ss[-1] - ss[-2])
    sups = jnp.stack(ss, 0)
    weights = jnp.einsum('nd,dkio->nkio', E, wpool)
    bias = E @ bpool
    x_g = jnp.einsum('knm,bmc->bknc', sups, x)
    x_g = jnp.transpose(x_g, (0, 2, 1, 3))
    return jnp.einsum('bnki,nkio->bno', x_g, weights) + bias


def _ref_cell(x, state, E, adj, p, K, H):
    xs = jnp.concatenate([x, state], axis=-1)
    zr = jax.nn.sigmoid(_ref_avwgcn(xs, E, adj, p['gate']['wpool'],
                                    p['gate']['bpool'], p['gate']['saw'], K))
    z, r = zr[..., :H], zr[..., H:]
    cand = jnp.concatenate([x, z * state], axis=-1)
    hc = jnp.tanh(_ref_avwgcn(cand, E, adj, p['update']['wpool'],
                              p['update']['bpool'], p['update']['saw'], K))
    return r * state + (1.0 - r) * hc


def _ref_forward(x, init_state, E, adj, params, K):
    B, T, N, Ci = x.shape
    H = init_state.shape[-1]
    cur = x
    hidden = []
    for i, p in enumerate(params):
        st = init_state[i]
        outs = []
        for t in range(T):
            st = _ref_cell(cur[:, t], st, E, adj, p, K, H)
            outs.append(st)
        hidden.append(st)
        cur = jnp.stack(outs, axis=1)
    return cur, hidden


# ----------------------------------------------------------------------------
if __name__ == "__main__":
    B, T, N, Ci, H, D, K, L = 2, 8, 16, 4, 32, 8, 2, 2   # batch, seq, nodes, dim_in, dim_out, embed, cheb_k, layers

    key = jax.random.PRNGKey(0)
    k_x, k_e, k_adj, pk = jax.random.split(key, 4)
    x = jax.random.normal(k_x, (B, T, N, Ci), jnp.float32)
    node_embeddings = jax.random.normal(k_e, (N, D), jnp.float32) * 0.5
    adj_m = jax.random.uniform(k_adj, (N, N), jnp.float32)
    init_state = jnp.zeros((L, B, N, H), jnp.float32)     # AVWDCRNN.init_hidden

    # Deterministic parameter init (shapes follow AVWGCN / SpatialAttention __init__).
    params = []
    for i in range(L):
        ci = Ci if i == 0 else H
        layer = {}
        for name, out_dim in (('gate', 2 * H), ('update', H)):
            pk, k1, k2, k3 = jax.random.split(pk, 4)
            scale_w = 1.0 / float((K * (ci + H) * D) ** 0.5)
            layer[name] = {
                'wpool': jax.random.normal(k1, (D, K, ci + H, out_dim), jnp.float32) * scale_w,
                'bpool': jax.random.normal(k2, (D, out_dim), jnp.float32) * 0.1,
                'saw': jax.random.normal(k3, (N, 2 * N), jnp.float32) * (1.0 / float((2 * N) ** 0.5)),
            }
        params.append(layer)

    out_seq, out_hidden = avwdcrnn_forward(x, init_state, node_embeddings, adj_m, params, K)
    jax.block_until_ready(out_seq)

    ref_seq, ref_hidden = _ref_forward(x, init_state, node_embeddings, adj_m, params, K)

    assert out_seq.shape == (B, T, N, H)
    assert len(out_hidden) == L and out_hidden[0].shape == (B, N, H)
    err = float(jnp.max(jnp.abs(out_seq - ref_seq)))
    assert jnp.allclose(out_seq, ref_seq, rtol=2.5e-2, atol=2.5e-2), \
        f"seq mismatch, max abs err={err}"
    for a, b in zip(out_hidden, ref_hidden):
        assert jnp.allclose(a, b, rtol=2.5e-2, atol=2.5e-2), "hidden mismatch"

    print("KERNEL_OK")
</pallas_src>

<mosaic_0001>
module attributes {stable_mosaic.version = 11 : i64} {
  func.func @_supports_kernel(%arg0: memref<16x8xf32, #tpu.memory_space<vmem>>, %arg1: memref<8x16xf32, #tpu.memory_space<vmem>>, %arg2: memref<16x16xf32, #tpu.memory_space<vmem>>, %arg3: memref<32x64xf32, #tpu.memory_space<vmem>>, %arg4: memref<8x16x16xf32, #tpu.memory_space<vmem>>) attributes {dimension_semantics = [], scalar_prefetch = 0 : i64, scratch_operands = 0 : i64, tpu.core_type = #tpu.core_type<tc>} {
    %c0 = arith.constant 0 : index
    %c0_0 = arith.constant 0 : index
    %0 = vector.load %arg0[%c0, %c0_0] : memref<16x8xf32, #tpu.memory_space<vmem>>, vector<16x8xf32>
    %c0_1 = arith.constant 0 : index
    %c0_2 = arith.constant 0 : index
    %1 = vector.load %arg2[%c0_1, %c0_2] : memref<16x16xf32, #tpu.memory_space<vmem>>, vector<16x16xf32>
    %c0_3 = arith.constant 0 : index
    %c0_4 = arith.constant 0 : index
    %2 = vector.load %arg1[%c0_3, %c0_4] : memref<8x16xf32, #tpu.memory_space<vmem>>, vector<8x16xf32>
    %cst = arith.constant dense<0.000000e+00> : vector<16x16xf32>
    %3 = tpu.matmul %0, %2, %cst {dimension_numbers = #tpu.dot_dimension_numbers<[1], [0], [0], [1], [0, 0, 1, 1], [], []>} : vector<16x8xf32>, vector<8x16xf32>, vector<16x16xf32> -> vector<16x16xf32>
    %cst_5 = arith.constant 0.000000e+00 : f32
    %4 = vector.broadcast %cst_5 : f32 to vector<16x16xf32>
    %5 = arith.maximumf %3, %4 : vector<16x16xf32>
    %cst_6 = arith.constant dense<0xFF800000> : vector<16xf32>
    %6 = vector.multi_reduction <maximumf>, %5, %cst_6 [1] : vector<16x16xf32> to vector<16xf32>
    %7 = vector.shape_cast %6 : vector<16xf32> to vector<16x1xf32>
    %8 = vector.broadcast %7 : vector<16x1xf32> to vector<16x16xf32>
    %9 = arith.subf %5, %8 : vector<16x16xf32>
    %10 = math.exp %9 : vector<16x16xf32>
    %cst_7 = arith.constant dense<0.000000e+00> : vector<16xf32>
    %11 = vector.multi_reduction <add>, %10, %cst_7 [1] : vector<16x16xf32> to vector<16xf32>
    %12 = vector.shape_cast %11 : vector<16xf32> to vector<16x1xf32>
    %13 = vector.broadcast %12 : vector<16x1xf32> to vector<16x16xf32>
    %14 = arith.divf %10, %13 : vector<16x16xf32>
    %15 = tpu.concatenate %14, %1 in 1 : vector<16x16xf32>, vector<16x16xf32> -> vector<16x32xf32>
    %c0_8 = arith.constant 0 : index
    %c0_9 = arith.constant 0 : index
    %16 = vector.load %arg3[%c0_8, %c0_9] : memref<32x64xf32, #tpu.memory_space<vmem>>, vector<32x64xf32>
    %cst_10 = arith.constant dense<0.000000e+00> : vector<16x64xf32>
    %17 = tpu.matmul %15, %16, %cst_10 {dimension_numbers = #tpu.dot_dimension_numbers<[1], [0], [0], [1], [0, 0, 1, 1], [], []>} : vector<16x32xf32>, vector<32x64xf32>, vector<16x64xf32> -> vector<16x64xf32>
    %18 = arith.negf %17 : vector<16x64xf32>
    %19 = math.exp %18 : vector<16x64xf32>
    %cst_11 = arith.constant 1.000000e+00 : f32
    %20 = vector.broadcast %cst_11 : f32 to vector<16x64xf32>
    %21 = arith.addf %20, %19 : vector<16x64xf32>
    %22 = arith.divf %20, %21 : vector<16x64xf32>
    %23 = tpu.iota {dimensions = array<i32: 0>} : vector<16x16xi32>
    %24 = tpu.iota {dimensions = array<i32: 1>} : vector<16x16xi32>
    %25 = arith.cmpi eq, %23, %24 : vector<16x16xi32>
    %26 = arith.extui %25 : vector<16x16xi1> to vector<16x16xi32>
    %27 = arith.sitofp %26 : vector<16x16xi32> to vector<16x16xf32>
    %28 = vector.extract_strided_slice %22 {offsets = [0, 0], sizes = [16, 16], strides = [1, 1]} : vector<16x64xf32> to vector<16x16xf32>
    %29 = arith.mulf %28, %1 : vector<16x16xf32>
    %cst_12 = arith.constant 1.000000e+00 : f32
    %30 = vector.broadcast %cst_12 : f32 to vector<16x16xf32>
    %31 = arith.subf %30, %28 : vector<16x16xf32>
    %32 = arith.mulf %31, %14 : vector<16x16xf32>
    %33 = arith.addf %29, %32 : vector<16x16xf32>
    %c0_13 = arith.constant 0 : index
    %c0_14 = arith.constant 0 : index
    %c0_15 = arith.constant 0 : index
    %34 = vector.load %arg4[%c0_13, %c0_14, %c0_15] : memref<8x16x16xf32, #tpu.memory_space<vmem>>, vector<1x16x16xf32>
    %35 = vector.shape_cast %34 : vector<1x16x16xf32> to vector<16x16xf32>
    %36 = vector.shape_cast %27 : vector<16x16xf32> to vector<1x16x16xf32>
    tpu.vector_store %arg4[%c0_13, %c0_14, %c0_15], %36 {strides = array<i32>} : memref<8x16x16xf32, #tpu.memory_space<vmem>>, vector<1x16x16xf32>,
    %c1 = arith.constant 1 : index
    %c0_16 = arith.constant 0 : index
    %c0_17 = arith.constant 0 : index
    %37 = vector.load %arg4[%c1, %c0_16, %c0_17] : memref<8x16x16xf32, #tpu.memory_space<vmem>>, vector<1x16x16xf32>
    %38 = vector.shape_cast %37 : vector<1x16x16xf32> to vector<16x16xf32>
    %39 = vector.shape_cast %33 : vector<16x16xf32> to vector<1x16x16xf32>
    tpu.vector_store %arg4[%c1, %c0_16, %c0_17], %39 {strides = array<i32>} : memref<8x16x16xf32, #tpu.memory_space<vmem>>, vector<1x16x16xf32>,
    %40 = vector.extract_strided_slice %22 {offsets = [0, 16], sizes = [16, 16], strides = [1, 1]} : vector<16x64xf32> to vector<16x16xf32>
    %41 = arith.mulf %40, %1 : vector<16x16xf32>
    %cst_18 = arith.constant 1.000000e+00 : f32
    %42 = vector.broadcast %cst_18 : f32 to vector<16x16xf32>
    %43 = arith.subf %42, %40 : vector<16x16xf32>
    %44 = arith.mulf %43, %14 : vector<16x16xf32>
    %45 = arith.addf %41, %44 : vector<16x16xf32>
    %c2 = arith.constant 2 : index
    %c0_19 = arith.constant 0 : index
    %c0_20 = arith.constant 0 : index
    %46 = vector.load %arg4[%c2, %c0_19, %c0_20] : memref<8x16x16xf32, #tpu.memory_space<vmem>>, vector<1x16x16xf32>
    %47 = vector.shape_cast %46 : vector<1x16x16xf32> to vector<16x16xf32>
    %48 = vector.shape_cast %27 : vector<16x16xf32> to vector<1x16x16xf32>
    tpu.vector_store %arg4[%c2, %c0_19, %c0_20], %48 {strides = array<i32>} : memref<8x16x16xf32, #tpu.memory_space<vmem>>, vector<1x16x16xf32>,
    %c3 = arith.constant 3 : index
    %c0_21 = arith.constant 0 : index
    %c0_22 = arith.constant 0 : index
    %49 = vector.load %arg4[%c3, %c0_21, %c0_22] : memref<8x16x16xf32, #tpu.memory_space<vmem>>, vector<1x16x16xf32>
    %50 = vector.shape_cast %49 : vector<1x16x16xf32> to vector<16x16xf32>
    %51 = vector.shape_cast %45 : vector<16x16xf32> to vector<1x16x16xf32>
    tpu.vector_store %arg4[%c3, %c0_21, %c0_22], %51 {strides = array<i32>} : memref<8x16x16xf32, #tpu.memory_space<vmem>>, vector<1x16x16xf32>,
    %52 = vector.extract_strided_slice %22 {offsets = [0, 32], sizes = [16, 16], strides = [1, 1]} : vector<16x64xf32> to vector<16x16xf32>
    %53 = arith.mulf %52, %1 : vector<16x16xf32>
    %cst_23 = arith.constant 1.000000e+00 : f32
    %54 = vector.broadcast %cst_23 : f32 to vector<16x16xf32>
    %55 = arith.subf %54, %52 : vector<16x16xf32>
    %56 = arith.mulf %55, %14 : vector<16x16xf32>
    %57 = arith.addf %53, %56 : vector<16x16xf32>
    %c4 = arith.constant 4 : index
    %c0_24 = arith.constant 0 : index
    %c0_25 = arith.constant 0 : index
    %58 = vector.load %arg4[%c4, %c0_24, %c0_25] : memref<8x16x16xf32, #tpu.memory_space<vmem>>, vector<1x16x16xf32>
    %59 = vector.shape_cast %58 : vector<1x16x16xf32> to vector<16x16xf32>
    %60 = vector.shape_cast %27 : vector<16x16xf32> to vector<1x16x16xf32>
    tpu.vector_store %arg4[%c4, %c0_24, %c0_25], %60 {strides = array<i32>} : memref<8x16x16xf32, #tpu.memory_space<vmem>>, vector<1x16x16xf32>,
    %c5 = arith.constant 5 : index
    %c0_26 = arith.constant 0 : index
    %c0_27 = arith.constant 0 : index
    %61 = vector.load %arg4[%c5, %c0_26, %c0_27] : memref<8x16x16xf32, #tpu.memory_space<vmem>>, vector<1x16x16xf32>
    %62 = vector.shape_cast %61 : vector<1x16x16xf32> to vector<16x16xf32>
    %63 = vector.shape_cast %57 : vector<16x16xf32> to vector<1x16x16xf32>
    tpu.vector_store %arg4[%c5, %c0_26, %c0_27], %63 {strides = array<i32>} : memref<8x16x16xf32, #tpu.memory_space<vmem>>, vector<1x16x16xf32>,
    %64 = vector.extract_strided_slice %22 {offsets = [0, 48], sizes = [16, 16], strides = [1, 1]} : vector<16x64xf32> to vector<16x16xf32>
    %65 = arith.mulf %64, %1 : vector<16x16xf32>
    %cst_28 = arith.constant 1.000000e+00 : f32
    %66 = vector.broadcast %cst_28 : f32 to vector<16x16xf32>
    %67 = arith.subf %66, %64 : vector<16x16xf32>
    %68 = arith.mulf %67, %14 : vector<16x16xf32>
    %69 = arith.addf %65, %68 : vector<16x16xf32>
    %c6 = arith.constant 6 : index
    %c0_29 = arith.constant 0 : index
    %c0_30 = arith.constant 0 : index
    %70 = vector.load %arg4[%c6, %c0_29, %c0_30] : memref<8x16x16xf32, #tpu.memory_space<vmem>>, vector<1x16x16xf32>
    %71 = vector.shape_cast %70 : vector<1x16x16xf32> to vector<16x16xf32>
    %72 = vector.shape_cast %27 : vector<16x16xf32> to vector<1x16x16xf32>
    tpu.vector_store %arg4[%c6, %c0_29, %c0_30], %72 {strides = array<i32>} : memref<8x16x16xf32, #tpu.memory_space<vmem>>, vector<1x16x16xf32>,
    %c7 = arith.constant 7 : index
    %c0_31 = arith.constant 0 : index
    %c0_32 = arith.constant 0 : index
    %73 = vector.load %arg4[%c7, %c0_31, %c0_32] : memref<8x16x16xf32, #tpu.memory_space<vmem>>, vector<1x16x16xf32>
    %74 = vector.shape_cast %73 : vector<1x16x16xf32> to vector<16x16xf32>
    %75 = vector.shape_cast %69 : vector<16x16xf32> to vector<1x16x16xf32>
    tpu.vector_store %arg4[%c7, %c0_31, %c0_32], %75 {strides = array<i32>} : memref<8x16x16xf32, #tpu.memory_space<vmem>>, vector<1x16x16xf32>,
    return
  }
}

</mosaic_0001>

<llo_original>
// kernel: tpu_custom_call.1
$region0: #{tpu_custom_call.1}
  #allocation0 [shape = 'u32[]', space=smem, size = 0x4, offset = 0x4, fixed_abs, tag = 'smem constant byte address 0x4 - core index']
  #allocation1 [shape = 'u32[72,128]{1,0:T(1,128)}', space=vmem, size = 0x9000, scoped, tag = 'internal scratch']
  %s0 = inlined_call_operand.vmem [shape: f32[16,8], index: 0, kind: input, shape index: {}]
  %s1 = inlined_call_operand.vmem [shape: f32[8,16], index: 1, kind: input, shape index: {}]
  %s2 = inlined_call_operand.vmem [shape: f32[16,16], index: 2, kind: input, shape index: {}]
  %s3 = inlined_call_operand.hbm [shape: f32[32,64], index: 3, kind: input, shape index: {}]
  %s4 = inlined_call_operand.hbm [shape: f32[8,16,16], index: 4, kind: output, shape index: {}]
  %s5 = sld [smem:[#allocation0]]
  $region30: #{tpu_custom_call.1} parent=0
    _
  %s7 = ssub.s32 1, %s5
  %s8 = scalar_select 0, %s7, %s5
  $region1: #{tpu_custom_call.1} parent=0
    #allocation2 [shape = 'u8[16384]{0}', space=vmem, size = 0x4000, scoped, tag = 'input window, operand 3, single buffered']
    #allocation3 [shape = 's32[1]{0}', space=sflag, size = 0x4, scoped, tag = 'scoped memory for tpu_custom_call.1']
    #allocation4 [shape = 's32[1]{0}', space=sflag, size = 0x4, scoped, tag = 'scoped memory for tpu_custom_call.1']
    #allocation5 [shape = 'u8[65536]{0}', space=vmem, size = 0x10000, scoped, tag = 'output window, operand 0, single buffered']
    %9 = vsyncpa [#allocation3], 0
    %10 = vsyncpa [#allocation4], 0
    // Predicated region
    $region2: #{tpu_custom_call.1} parent=1 // pred_check
      _
    $region3: #{tpu_custom_call.1} parent=1 // pred_check_branch
      %12 = sbr.rel (0) target = $region5
    $region4: #{tpu_custom_call.1} parent=1 // pred_region
      _
    $region5: #{tpu_custom_call.1} parent=1 // pred_fallthru
      _
    // Predicated region
    $region6: #{tpu_custom_call.1} parent=1 // pred_check
      _
    $region7: #{tpu_custom_call.1} parent=1 // pred_check_branch
      %14 = sbr.rel (0) target = $region9
    $region8: #{tpu_custom_call.1} parent=1 // pred_region
      _
    $region9: #{tpu_custom_call.1} parent=1 // pred_fallthru
      _
    // Predicated region
    $region10: #{tpu_custom_call.1} parent=1 // pred_check
      _
    $region11: #{tpu_custom_call.1} parent=1 // pred_check_branch
      %16 = sbr.rel (0) target = $region13
    $region12: #{tpu_custom_call.1} parent=1 // pred_region
      _
    $region13: #{tpu_custom_call.1} parent=1 // pred_fallthru
      _
    // Predicated region
    $region14: #{tpu_custom_call.1} parent=1 // pred_check
      _
    $region15: #{tpu_custom_call.1} parent=1 // pred_check_branch
      %18 = sbr.rel (0) target = $region17
    $region16: #{tpu_custom_call.1} parent=1 // pred_region
      %20 = vsyncadd [#allocation3], 0
      %s21 = sshll.u32 %s3, 4
      %s22 = int_to_ptr.hbm [resolvable:$true] %s21
      %s23 = sshll.u32 [#allocation2], 4
      %s24 = int_to_ptr.vmem [resolvable:$true] %s23
      %29 = dma.hbm_to_vmem [thread:$0]  %s22, 512, %s24, [#allocation3], 128, 128, 8
    $region17: #{tpu_custom_call.1} parent=1 // pred_fallthru
      _
    // Predicated region
    $region18: #{tpu_custom_call.1} parent=1 // pred_check
      _
    $region19: #{tpu_custom_call.1} parent=1 // pred_check_branch
      %31 = sbr.rel (0) target = $region21
    $region20: #{tpu_custom_call.1} parent=1 // pred_region
      %33 = dma.done [#allocation3], 512
    $region21: #{tpu_custom_call.1} parent=1 // pred_fallthru
      _
    %v34 = vld [vmem:[%s0] sm:$0xff]
    %v35 = vld [vmem:[%s0 + $0x8] sm:$0xff]
    %v36 = vld [vmem:[%s2] sm:$0xff]
    %v37 = vld [vmem:[%s2 + $0x8] sm:$0xff]
    %v38 = vld [vmem:[%s1] sm:$0xff]
    %vm39 = vcmask 64512
    %v41 = vsel %vm39, %v34, 0
    %v44 = vsel %vm39, %v35, 0
    %46 = vmatpush.msra.mxu0 0.0
    %47 = vmatpush.msra.mxu0 0.0
    %48 = vmatpush.msra.mxu0 0.0
    %49 = vmatpush.msra.mxu0 0.0
    %50 = vmatpush.msra.mxu0 0.0
    %51 = vmatpush.msra.mxu0 0.0
    %52 = vmatpush.msra.mxu0 0.0
    %53 = vmatpush.msra.mxu0 0.0
    %54 = vmatpush.msra.mxu0 0.0
    %55 = vmatpush.msra.mxu0 0.0
    %56 = vmatpush.msra.mxu0 0.0
    %57 = vmatpush.msra.mxu0 0.0
    %58 = vmatpush.msra.mxu0 0.0
    %59 = vmatpush.msra.mxu0 0.0
    %60 = vmatpush.msra.mxu0 0.0
    %61 = vmatpush.msra.mxu0 %v38
    %62 = vmatmul.f32.gmra.mxu0 %v41
    %v63 = vpop.f32.mrf.mxu0
    %v64 = vadd.f32 0.0, %v63
    %65 = vmatmul.f32.gmra.mxu0 %v44
    %v66 = vpop.f32.mrf.mxu0
    %v67 = vadd.f32 0.0, %v66
    %68 = vdwg.mxu0
    %v69 = vmax.f32 %v64, 0.0
    %v70 = vmax.f32 %v67, 0.0
    %vm71 = vcmask 130048
    %v72 = vsel %vm71, %v69, -inf
    %73 = vmax.xlane.f32.xlu0 %v72
    %v74 = vpop.xlane.xlu0 %73
    %v75 = vsel %vm71, %v70, -inf
    %76 = vmax.xlane.f32.xlu0 %v75
    %v77 = vpop.xlane.xlu0 %76
    %v78 = vsub.f32 %v69, %v74
    %v79 = vsub.f32 %v70, %v77
    %v80 = vmul.f32 %v78, 1.442695
    %v81 = vpow.pop %v80
    %v82 = vmul.f32 %v79, 1.442695
    %v83 = vpow.pop %v82
    %v84 = vsel %vm71, %v81, 0.0
    %85 = vadd.xlane.f32.xlu0 %v84
    %v86 = vpop.xlane.xlu0 %85
    %v87 = vsel %vm71, %v83, 0.0
    %88 = vadd.xlane.f32.xlu0 %v87
    %v89 = vpop.xlane.xlu0 %88
    %v90 = vrcp.pop %v86
    %v91 = vmul.f32 %v86, %v90
    %v92 = vsub.f32 1.0, %v91
    %v93 = vmul.f32 %v90, %v92
    %v94 = vadd.f32 %v90, %v93
    %vm95 = vweird.f32 %v86
    %vm96 = vweird.f32 %v90
    %vm97 = vmor %vm95, %vm96
    %v98 = vsel %vm97, %v90, %v94
    %v99 = vand.u32 2147483647, %v86
    %vm100 = vcmp.eq.f32.partialorder %v99, 8.507059e+37
    %v101 = vand.u32 %v86, 2147483648
    %v102 = vor.u32 1.1754944e-38, %v101
    %v103 = vsel %vm100, %v102, %v98
    %v104 = vmul.f32 %v81, %v103
    %v105 = vrcp.pop %v89
    %v106 = vmul.f32 %v89, %v105
    %v107 = vsub.f32 1.0, %v106
    %v108 = vmul.f32 %v105, %v107
    %v109 = vadd.f32 %v105, %v108
    %vm110 = vweird.f32 %v89
    %vm111 = vweird.f32 %v105
    %vm112 = vmor %vm110, %vm111
    %v113 = vsel %vm112, %v105, %v109
    %v114 = vand.u32 2147483647, %v89
    %vm115 = vcmp.eq.f32.partialorder %v114, 8.507059e+37
    %v116 = vand.u32 %v89, 2147483648
    %v117 = vor.u32 1.1754944e-38, %v116
    %v118 = vsel %vm115, %v117, %v113
    %v119 = vmul.f32 %v83, %v118
    %122 = vrot.lane.b32.xlu0 %v36, 16
    %v123 = vpop.permute.xlu0 %122
    %124 = vrot.lane.b32.xlu0 %v37, 16
    %v125 = vpop.permute.xlu0 %124
    %v128 = vsel %vm71, %v104, %v123
    %v129 = vsel %vm71, %v119, %v125
    %v130 = vld [vmem:[#allocation2] sm:$0xff]
    %v131 = vld [vmem:[#allocation2 + $0x8] sm:$0xff]
    %v132 = vld [vmem:[#allocation2 + $0x10] sm:$0xff]
    %v133 = vld [vmem:[#allocation2 + $0x18] sm:$0xff]
    %vm134 = vcmask 261120
    %v136 = vsel %vm134, %v128, 0
    %v139 = vsel %vm134, %v129, 0
    %141 = vmatpush.msra.mxu0 0.0
    %142 = vmatpush.msra.mxu0 0.0
    %143 = vmatpush.msra.mxu0 0.0
    %144 = vmatpush.msra.mxu0 0.0
    %145 = vmatpush.msra.mxu0 0.0
    %146 = vmatpush.msra.mxu0 0.0
    %147 = vmatpush.msra.mxu0 0.0
    %148 = vmatpush.msra.mxu0 0.0
    %149 = vmatpush.msra.mxu0 0.0
    %150 = vmatpush.msra.mxu0 0.0
    %151 = vmatpush.msra.mxu0 0.0
    %152 = vmatpush.msra.mxu0 0.0
    %153 = vmatpush.msra.mxu0 %v133
    %154 = vmatpush.msra.mxu0 %v132
    %155 = vmatpush.msra.mxu0 %v131
    %156 = vmatpush.msra.mxu0 %v130
    %157 = vmatmul.f32.gmra.mxu0 %v136
    %v158 = vpop.f32.mrf.mxu0
    %v159 = vadd.f32 0.0, %v158
    %160 = vmatmul.f32.gmra.mxu0 %v139
    %v161 = vpop.f32.mrf.mxu0
    %v162 = vadd.f32 0.0, %v161
    %163 = vdwg.mxu0
    %v164 = vxor.u32 %v159, 2147483648
    %v165 = vxor.u32 %v162, 2147483648
    %v166 = vmul.f32 %v164, 1.442695
    %v167 = vpow.pop %v166
    %v168 = vmul.f32 %v165, 1.442695
    %v169 = vpow.pop %v168
    %v170 = vadd.f32 %v167, 1.0
    %v171 = vadd.f32 %v169, 1.0
    %v172 = vrcp.pop %v170
    %v173 = vmul.f32 %v170, %v172
    %v174 = vsub.f32 1.0, %v173
    %v175 = vmul.f32 %v172, %v174
    %v176 = vadd.f32 %v172, %v175
    %vm177 = vweird.f32 %v170
    %vm178 = vweird.f32 %v172
    %vm179 = vmor %vm177, %vm178
    %v180 = vsel %vm179, %v172, %v176
    %v181 = vand.u32 2147483647, %v170
    %vm182 = vcmp.eq.f32.partialorder %v181, 8.507059e+37
    %v183 = vand.u32 %v170, 2147483648
    %v184 = vor.u32 1.1754944e-38, %v183
    %v185 = vsel %vm182, %v184, %v180
    %v186 = vmul.f32 1.0, %v185
    %v187 = vrcp.pop %v171
    %v188 = vmul.f32 %v171, %v187
    %v189 = vsub.f32 1.0, %v188
    %v190 = vmul.f32 %v187, %v189
    %v191 = vadd.f32 %v187, %v190
    %vm192 = vweird.f32 %v171
    %vm193 = vweird.f32 %v187
    %vm194 = vmor %vm192, %vm193
    %v195 = vsel %vm194, %v187, %v191
    %v196 = vand.u32 2147483647, %v171
    %vm197 = vcmp.eq.f32.partialorder %v196, 8.507059e+37
    %v198 = vand.u32 %v171, 2147483648
    %v199 = vor.u32 1.1754944e-38, %v198
    %v200 = vsel %vm197, %v199, %v195
    %v201 = vmul.f32 1.0, %v200
    %v202 = vlaneseq
    %v203 = vshrl.u32 %v202, 7
    %v204 = vadd.s32 %v203, 8
    %v205 = vlaneseq
    %v206 = vand.u32 %v205, 127
    %vm207 = vcmp.eq.s32.totalorder %v203, %v206
    %vm208 = vcmp.eq.s32.totalorder %v204, %v206
    %v209 = vsel %vm207, 1, 0
    %v210 = vsel %vm208, 1, 0
    %v211 = vcvt.s32.f32 %v209
    %v212 = vcvt.s32.f32 %v210
    %v213 = vmul.f32 %v186, %v36
    %v214 = vmul.f32 %v201, %v37
    %v215 = vsub.f32 1.0, %v186
    %v216 = vsub.f32 1.0, %v201
    %v217 = vmul.f32 %v215, %v104
    %v218 = vmul.f32 %v216, %v119
    %v219 = vadd.f32 %v213, %v217
    %v220 = vadd.f32 %v214, %v218
    %221 = vst.msk [vmem:[#allocation5] sm:$0xff] %vm71, %v211
    %222 = vst.msk [vmem:[#allocation5 + $0x8] sm:$0xff] %vm71, %v212
    %s223 = scalar_lea.vmem [#allocation5], 16
    %224 = vst.msk [vmem:[%s223] sm:$0xff] %vm71, %v219
    %225 = vst.msk [vmem:[%s223 + $0x8] sm:$0xff] %vm71, %v220
    %v226 = vmul.f32 %v186, %v123
    %v227 = vmul.f32 %v201, %v125
    %230 = vrot.lane.b32.xlu0 %v104, 16
    %v231 = vpop.permute.xlu0 %230
    %232 = vrot.lane.b32.xlu0 %v119, 16
    %v233 = vpop.permute.xlu0 %232
    %v236 = vmul.f32 %v215, %v231
    %v237 = vmul.f32 %v216, %v233
    %v238 = vadd.f32 %v226, %v236
    %v239 = vadd.f32 %v227, %v237
    %s240 = scalar_lea.vmem [#allocation5], 32
    %241 = vst.msk [vmem:[%s240] sm:$0xff] %vm71, %v211
    %242 = vst.msk [vmem:[%s240 + $0x8] sm:$0xff] %vm71, %v212
    %245 = vrot.lane.b32.xlu0 %v238, 112
    %v246 = vpop.permute.xlu0 %245
    %247 = vrot.lane.b32.xlu0 %v239, 112
    %v248 = vpop.permute.xlu0 %247
    %s251 = scalar_lea.vmem [#allocation5], 48
    %252 = vst.msk [vmem:[%s251] sm:$0xff] %vm71, %v246
    %253 = vst.msk [vmem:[%s251 + $0x8] sm:$0xff] %vm71, %v248
    %254 = vrot.lane.b32.xlu0 %v36, 32
    %v255 = vpop.permute.xlu0 %254
    %256 = vrot.lane.b32.xlu0 %v37, 32
    %v257 = vpop.permute.xlu0 %256
    %v260 = vmul.f32 %v186, %v255
    %v261 = vmul.f32 %v201, %v257
    %262 = vrot.lane.b32.xlu0 %v104, 32
    %v263 = vpop.permute.xlu0 %262
    %264 = vrot.lane.b32.xlu0 %v119, 32
    %v265 = vpop.permute.xlu0 %264
    %v268 = vmul.f32 %v215, %v263
    %v269 = vmul.f32 %v216, %v265
    %v270 = vadd.f32 %v260, %v268
    %v271 = vadd.f32 %v261, %v269
    %s272 = scalar_lea.vmem [#allocation5], 64
    %273 = vst.msk [vmem:[%s272] sm:$0xff] %vm71, %v211
    %274 = vst.msk [vmem:[%s272 + $0x8] sm:$0xff] %vm71, %v212
    %277 = vrot.lane.b32.xlu0 %v270, 96
    %v278 = vpop.permute.xlu0 %277
    %279 = vrot.lane.b32.xlu0 %v271, 96
    %v280 = vpop.permute.xlu0 %279
    %s283 = scalar_lea.vmem [#allocation5], 80
    %284 = vst.msk [vmem:[%s283] sm:$0xff] %vm71, %v278
    %285 = vst.msk [vmem:[%s283 + $0x8] sm:$0xff] %vm71, %v280
    %286 = vrot.lane.b32.xlu0 %v36, 48
    %v287 = vpop.permute.xlu0 %286
    %288 = vrot.lane.b32.xlu0 %v37, 48
    %v289 = vpop.permute.xlu0 %288
    %v292 = vmul.f32 %v186, %v287
    %v293 = vmul.f32 %v201, %v289
    %294 = vrot.lane.b32.xlu0 %v104, 48
    %v295 = vpop.permute.xlu0 %294
    %296 = vrot.lane.b32.xlu0 %v119, 48
    %v297 = vpop.permute.xlu0 %296
    %v300 = vmul.f32 %v215, %v295
    %v301 = vmul.f32 %v216, %v297
    %v302 = vadd.f32 %v292, %v300
    %v303 = vadd.f32 %v293, %v301
    %s304 = scalar_lea.vmem [#allocation5], 96
    %305 = vst.msk [vmem:[%s304] sm:$0xff] %vm71, %v211
    %306 = vst.msk [vmem:[%s304 + $0x8] sm:$0xff] %vm71, %v212
    %309 = vrot.lane.b32.xlu0 %v302, 80
    %v310 = vpop.permute.xlu0 %309
    %311 = vrot.lane.b32.xlu0 %v303, 80
    %v312 = vpop.permute.xlu0 %311
    %s315 = scalar_lea.vmem [#allocation5], 112
    %316 = vst.msk [vmem:[%s315] sm:$0xff] %vm71, %v310
    %317 = vst.msk [vmem:[%s315 + $0x8] sm:$0xff] %vm71, %v312
    // Predicated region
    $region22: #{tpu_custom_call.1} parent=1 // pred_check
      _
    $region23: #{tpu_custom_call.1} parent=1 // pred_check_branch
      %319 = sbr.rel (0) target = $region25
    $region24: #{tpu_custom_call.1} parent=1 // pred_region
      %321 = vsyncadd [#allocation4], 0
      %s322 = sshll.u32 [#allocation5], 4
      %s323 = int_to_ptr.vmem [resolvable:$true] %s322
      %s324 = sshll.u32 %s4, 4
      %s325 = int_to_ptr.hbm [resolvable:$true] %s324
      %330 = dma.vmem_to_hbm [thread:$0]  %s323, 2048, %s325, [#allocation4], 128, 128, 8
    $region25: #{tpu_custom_call.1} parent=1 // pred_fallthru
      _
    // Predicated region
    $region26: #{tpu_custom_call.1} parent=1 // pred_check
      _
    $region27: #{tpu_custom_call.1} parent=1 // pred_check_branch
      %332 = sbr.rel (0) target = $region29
    $region28: #{tpu_custom_call.1} parent=1 // pred_region
      %334 = dma.done [#allocation4], 2048
    $region29: #{tpu_custom_call.1} parent=1 // pred_fallthru
      _
    %335 = vsyncpa [#allocation3], 1
    %336 = vsyncpa [#allocation4], 1

</llo_original>
